<compile_context>
chip_gen: v7x
topology: tpu7x:2x2x1
jax: 0.10.0
libtpu: 0.0.40
codegen_flags: <defaults>
</compile_context>

<pallas_src>
import functools

import jax
import jax.numpy as jnp
from jax.experimental import pallas as pl
from jax.experimental.pallas import tpu as pltpu


def _round_up(n, m):
    return ((n + m - 1) // m) * m


def _attention_kernel(x_ref, w1_ref, bias1_ref, w2_ref, b2_ref, o_ref, *,
                      tb, hw_valid, hw_pad):
    # x_ref:     (TB, Cin_p, HW_p)  image features (channels on sublanes, HW on lanes)
    # w1_ref:    (mid_p, Cin_p)     conv1 weight (resident; constant index_map)
    # bias1_ref: (TB, mid_p, 1)     conv1 bias + projected query, per image (f32)
    # w2_ref:    (G, mid_p)         conv2 weight
    # b2_ref:    (G, 1)             conv2 bias (f32)
    # o_ref:     (TB, G, HW_p)      softmax attention maps (lane-dense store)
    w1 = w1_ref[...]
    w2 = w2_ref[...]
    b2 = b2_ref[...]

    needs_mask = hw_pad != hw_valid
    if needs_mask:
        # Hoisted: same mask for every image and every grid step.
        lane = jax.lax.broadcasted_iota(jnp.int32, (w2.shape[0], hw_pad), 1)
        pad_mask = lane < hw_valid

    # Unrolled loop over the TB images of this block: per-image 2-D MXU matmuls.
    for t in range(tb):
        x = x_ref[t]                                                    # (Cin_p, HW_p)

        # conv1 (1x1 conv == channel matmul); f32 accumulation on the MXU.
        v = jnp.dot(w1, x, preferred_element_type=jnp.float32)          # (mid_p, HW_p)

        # + (conv1 bias + query projection) broadcast along lanes, ReLU — f32 on the VPU.
        vq = jnp.maximum(v + bias1_ref[t], 0.0)                         # (mid_p, HW_p)

        # conv2 -> attention logits; matmul inputs stay in the compute dtype (bf16 MXU
        # path when bf16), accumulation in f32.
        logits = jnp.dot(w2, vq.astype(w2.dtype),
                         preferred_element_type=jnp.float32) + b2       # (G, HW_p)

        if needs_mask:
            # Exclude padded spatial lanes from the softmax.
            logits = jnp.where(pad_mask, logits, jnp.float32(-1e30))

        # Numerically-stable softmax over the spatial (lane) axis; exact normaliser
        # (it is only (G, 1) per image — the approximate reciprocal saves nothing).
        m = jnp.max(logits, axis=-1, keepdims=True)
        e = jnp.exp(logits - m)
        s = jnp.sum(e, axis=-1, keepdims=True)
        o_ref[t] = (e * (1.0 / s)).astype(o_ref.dtype)


def _vmem_budget_bytes():
    try:
        return int(pltpu.get_tpu_info().vmem_capacity_bytes)
    except Exception:
        return 64 * 1024 * 1024   # conservative: v7x per-TensorCore VMEM


def _choose_tb(batch, cin_p, hw_p, mid_p, glimpses, itemsize, vmem_budget):
    # Per-image footprint of the batch-blocked operands (x block, fused bias, f32 output).
    per_img = (cin_p * hw_p * itemsize
               + mid_p * 4
               + glimpses * hw_p * 4)
    budget = vmem_budget // 4                  # leave room for weights + headroom
    tb = max(1, min(16, budget // max(1, 2 * per_img)))   # 2x for double-buffering
    # Keep at least 2 grid steps so v7x's two TensorCores both get work.
    tb = min(tb, max(1, -(-batch // 2)))
    return tb


def attention_forward(image_nchw, query, params, *, compute_dtype=jnp.bfloat16):
    """image_nchw: (B, Cin, H, W); query: (B, Qdim). Returns (B, glimpses, H, W).

    compute_dtype: dtype of the MXU matmul inputs (bf16 default). Accumulation, bias,
    ReLU and softmax stay in f32.
    """
    w1, b1, wq, bq, w2, b2 = params
    B, Cin, H, W = image_nchw.shape
    HW = H * W
    mid = w1.shape[0]
    G = w2.shape[0]

    itemsize = jnp.dtype(compute_dtype).itemsize
    sub = 8 * (4 // itemsize)            # sublane packing: 8 (f32) / 16 (bf16)
    cin_p = _round_up(Cin, sub)
    mid_p = _round_up(mid, sub)
    hw_p = _round_up(HW, 128)            # lane-dense stores / full MXU N tiles

    vmem_budget = _vmem_budget_bytes()
    tb = _choose_tb(B, cin_p, hw_p, mid_p, G, itemsize, vmem_budget)
    b_pad = _round_up(B, tb)

    # NCHW -> (B, Cin, HW): pure reshape, then zero-pad batch / channel / spatial.
    x = image_nchw.reshape(B, Cin, HW).astype(compute_dtype)
    x = jnp.pad(x, ((0, b_pad - B), (0, cin_p - Cin), (0, hw_p - HW)))

    w1p = jnp.pad(w1.astype(compute_dtype), ((0, mid_p - mid), (0, cin_p - Cin)))
    w2p = jnp.pad(w2.astype(compute_dtype), ((0, 0), (0, mid_p - mid)))

    # Hoist the query projection (nn.Linear) out of the kernel: one batched XLA matmul,
    # folded with conv1's bias into a single f32 column per image.
    qp = jnp.dot(query.astype(jnp.float32), wq.astype(jnp.float32),
                 precision=jax.lax.Precision.HIGHEST) + bq              # (B, mid)
    bias1 = (qp + b1).astype(jnp.float32)                               # (B, mid)
    bias1 = jnp.pad(bias1, ((0, b_pad - B), (0, mid_p - mid)))[:, :, None]  # (B_pad, mid_p, 1)
    b2c = b2[:, None].astype(jnp.float32)                               # (G, 1)

    # Generation-aware VMEM limit (double-buffered blocked operands + resident weights).
    est_vmem = (2 * tb * (cin_p * hw_p * itemsize + mid_p * 4 + G * hw_p * 4)
                + 2 * (mid_p * cin_p + G * mid_p) * itemsize + 2 * G * 4)
    vmem_limit = int(min(vmem_budget, max(est_vmem + (4 << 20), 32 << 20)))

    cost = pl.CostEstimate(
        flops=2 * B * HW * (Cin * mid + mid * G),
        transcendentals=B * G * HW,
        bytes_accessed=(x.size * itemsize + w1p.size * itemsize + w2p.size * itemsize
                        + bias1.size * 4 + b2c.size * 4 + b_pad * G * hw_p * 4),
    )

    kernel = functools.partial(_attention_kernel, tb=tb, hw_valid=HW, hw_pad=hw_p)

    out = pl.pallas_call(
        kernel,
        out_shape=jax.ShapeDtypeStruct((b_pad, G, hw_p), jnp.float32),
        grid_spec=pltpu.PrefetchScalarGridSpec(
            num_scalar_prefetch=0,
            grid=(b_pad // tb,),
            in_specs=[
                pl.BlockSpec((tb, cin_p, hw_p), lambda b: (b, 0, 0)),   # image features
                pl.BlockSpec((mid_p, cin_p), lambda b: (0, 0)),         # conv1 weight (resident)
                pl.BlockSpec((tb, mid_p, 1), lambda b: (b, 0, 0)),      # fused bias + query
                pl.BlockSpec((G, mid_p), lambda b: (0, 0)),             # conv2 weight (resident)
                pl.BlockSpec((G, 1), lambda b: (0, 0)),                 # conv2 bias
            ],
            out_specs=pl.BlockSpec((tb, G, hw_p), lambda b: (b, 0, 0)),
        ),
        compiler_params=pltpu.CompilerParams(
            dimension_semantics=("parallel",),
            vmem_limit_bytes=vmem_limit,
        ),
        cost_estimate=cost,
    )(x, w1p, bias1, w2p, b2c)

    # Drop batch / spatial padding; (B, G, HW) -> (B, G, H, W) is a pure reshape.
    return out[:B, :, :HW].reshape(B, G, H, W)


def init_params(key, vis_dim, mid_dim, glimpses, query_dim):
    """Synthetic params in PyTorch-native orientations (conv weights (out,in), linear^T)."""
    k1, k2, k3, k4, k5, k6 = jax.random.split(key, 6)
    w1 = jax.random.normal(k1, (mid_dim, vis_dim), jnp.float32) * 0.1   # Conv2d(vis,mid,1)
    b1 = jax.random.normal(k2, (mid_dim,), jnp.float32) * 0.1
    wq = jax.random.normal(k3, (query_dim, mid_dim), jnp.float32) * 0.1  # Linear weight^T
    bq = jax.random.normal(k4, (mid_dim,), jnp.float32) * 0.1
    w2 = jax.random.normal(k5, (glimpses, mid_dim), jnp.float32) * 0.1   # Conv2d(mid,G,1)
    b2 = jax.random.normal(k6, (glimpses,), jnp.float32) * 0.1
    return (w1, b1, wq, bq, w2, b2)


def reference_forward(image_nchw, query, params):
    """Pure-JAX reference mirroring the PyTorch forward (for verification)."""
    w1, b1, wq, bq, w2, b2 = params
    B, Cin, H, W = image_nchw.shape
    hi = jax.lax.Precision.HIGHEST
    v = jnp.einsum("mc,bchw->bmhw", w1, image_nchw, precision=hi) + b1[None, :, None, None]
    q = jnp.dot(query, wq, precision=hi) + bq
    vq = jax.nn.relu(v + q[:, :, None, None])
    a = jnp.einsum("gm,bmhw->bghw", w2, vq, precision=hi) + b2[None, :, None, None]
    a = a.reshape(B, -1, H * W)
    a = jax.nn.softmax(a, axis=-1)
    return a.reshape(B, -1, H, W)


def _run_case(key, B, vis_dim, H, W, mid_dim, glimpses, query_dim):
    kx, kq, kp = jax.random.split(key, 3)
    image = jax.random.normal(kx, (B, vis_dim, H, W), jnp.float32)
    query = jax.random.normal(kq, (B, query_dim), jnp.float32)
    params = init_params(kp, vis_dim, mid_dim, glimpses, query_dim)
    ref = reference_forward(image, query, params)

    # f32 matmul-input path — tight check.
    out_f32 = jax.block_until_ready(
        attention_forward(image, query, params, compute_dtype=jnp.float32))
    assert out_f32.shape == (B, glimpses, H, W)
    err32 = float(jnp.max(jnp.abs(out_f32 - ref)))
    assert jnp.allclose(out_f32, ref, atol=1e-4, rtol=1e-3), err32

    # Default bf16 matmul-input path — tolerance covers bf16 rounding of the logits.
    out_bf16 = jax.block_until_ready(attention_forward(image, query, params))
    errbf = float(jnp.max(jnp.abs(out_bf16 - ref)))
    assert out_bf16.shape == (B, glimpses, H, W)
    assert jnp.allclose(out_bf16, ref, atol=2e-3, rtol=2e-2), errbf


if __name__ == "__main__":
    key = jax.random.PRNGKey(0)
    k1, k2 = jax.random.split(key)
    # Aligned demo shapes: HW = 256 is already lane-dense (no padding / masking path).
    _run_case(k1, B=2, vis_dim=8, H=16, W=16, mid_dim=32, glimpses=2, query_dim=12)
    # Unaligned shapes (HW = 196 -> 256, odd Cin/mid, B=3 -> batch padding) exercise the
    # padding + softmax-masking path used by real 14x14 VQA feature maps.
    _run_case(k2, B=3, vis_dim=6, H=14, W=14, mid_dim=20, glimpses=3, query_dim=10)
    print("KERNEL_OK")
</pallas_src>

<mosaic_0001>
module attributes {stable_mosaic.version = 11 : i64} {
  func.func @_attention_kernel(%arg0: i32, %arg1: memref<1x8x256xf32, #tpu.memory_space<vmem>>, %arg2: memref<32x8xf32, #tpu.memory_space<vmem>>, %arg3: memref<1x32x1xf32, #tpu.memory_space<vmem>>, %arg4: memref<2x32xf32, #tpu.memory_space<vmem>>, %arg5: memref<2x1xf32, #tpu.memory_space<vmem>>, %arg6: memref<1x2x256xf32, #tpu.memory_space<vmem>>) attributes {dimension_semantics = [#tpu.dimension_semantics<parallel>], iteration_bounds = array<i64: 2>, scalar_prefetch = 0 : i64, scratch_operands = 0 : i64, tpu.core_type = #tpu.core_type<tc>, window_params = [{transform_indices = @transform_0, window_bounds = array<i64: 1, 8, 256>}, {pipeline_mode = #tpu.pipeline_mode<synchronous>, transform_indices = @transform_1, window_bounds = array<i64: 32, 8>}, {transform_indices = @transform_2, window_bounds = array<i64: 1, 32, 1>}, {pipeline_mode = #tpu.pipeline_mode<synchronous>, transform_indices = @transform_3, window_bounds = array<i64: 2, 32>}, {pipeline_mode = #tpu.pipeline_mode<synchronous>, transform_indices = @transform_4, window_bounds = array<i64: 2, 1>}, {transform_indices = @transform_5, window_bounds = array<i64: 1, 2, 256>}]} {
    %c0 = arith.constant 0 : index
    %c0_0 = arith.constant 0 : index
    %0 = vector.load %arg2[%c0, %c0_0] : memref<32x8xf32, #tpu.memory_space<vmem>>, vector<32x8xf32>
    %c0_1 = arith.constant 0 : index
    %c0_2 = arith.constant 0 : index
    %1 = vector.load %arg4[%c0_1, %c0_2] : memref<2x32xf32, #tpu.memory_space<vmem>>, vector<2x32xf32>
    %c0_3 = arith.constant 0 : index
    %c0_4 = arith.constant 0 : index
    %2 = vector.load %arg5[%c0_3, %c0_4] : memref<2x1xf32, #tpu.memory_space<vmem>>, vector<2x1xf32>
    %c0_5 = arith.constant 0 : index
    %c0_6 = arith.constant 0 : index
    %c0_7 = arith.constant 0 : index
    %3 = vector.load %arg1[%c0_5, %c0_6, %c0_7] : memref<1x8x256xf32, #tpu.memory_space<vmem>>, vector<1x8x256xf32>
    %4 = vector.shape_cast %3 : vector<1x8x256xf32> to vector<8x256xf32>
    %cst = arith.constant dense<0.000000e+00> : vector<32x256xf32>
    %5 = tpu.matmul %0, %4, %cst {dimension_numbers = #tpu.dot_dimension_numbers<[1], [0], [0], [1], [0, 0, 1, 1], [], []>} : vector<32x8xf32>, vector<8x256xf32>, vector<32x256xf32> -> vector<32x256xf32>
    %c0_8 = arith.constant 0 : index
    %c0_9 = arith.constant 0 : index
    %c0_10 = arith.constant 0 : index
    %6 = vector.load %arg3[%c0_8, %c0_9, %c0_10] : memref<1x32x1xf32, #tpu.memory_space<vmem>>, vector<1x32x1xf32>
    %7 = vector.shape_cast %6 : vector<1x32x1xf32> to vector<32x1xf32>
    %8 = vector.broadcast %7 : vector<32x1xf32> to vector<32x256xf32>
    %9 = arith.addf %5, %8 : vector<32x256xf32>
    %cst_11 = arith.constant 0.000000e+00 : f32
    %10 = vector.broadcast %cst_11 : f32 to vector<32x256xf32>
    %11 = arith.maximumf %9, %10 : vector<32x256xf32>
    %cst_12 = arith.constant dense<0.000000e+00> : vector<2x256xf32>
    %12 = tpu.matmul %1, %11, %cst_12 {dimension_numbers = #tpu.dot_dimension_numbers<[1], [0], [0], [1], [0, 0, 1, 1], [], []>} : vector<2x32xf32>, vector<32x256xf32>, vector<2x256xf32> -> vector<2x256xf32>
    %13 = vector.broadcast %2 : vector<2x1xf32> to vector<2x256xf32>
    %14 = arith.addf %12, %13 : vector<2x256xf32>
    %cst_13 = arith.constant dense<0xFF800000> : vector<2xf32>
    %15 = vector.multi_reduction <maximumf>, %14, %cst_13 [1] : vector<2x256xf32> to vector<2xf32>
    %16 = vector.shape_cast %15 : vector<2xf32> to vector<2x1xf32>
    %17 = vector.broadcast %16 : vector<2x1xf32> to vector<2x256xf32>
    %18 = arith.subf %14, %17 : vector<2x256xf32>
    %19 = math.exp %18 : vector<2x256xf32>
    %cst_14 = arith.constant dense<0.000000e+00> : vector<2xf32>
    %20 = vector.multi_reduction <add>, %19, %cst_14 [1] : vector<2x256xf32> to vector<2xf32>
    %21 = vector.shape_cast %20 : vector<2xf32> to vector<2x1xf32>
    %cst_15 = arith.constant 1.000000e+00 : f32
    %22 = vector.broadcast %cst_15 : f32 to vector<2x1xf32>
    %23 = arith.divf %22, %21 : vector<2x1xf32>
    %24 = vector.broadcast %23 : vector<2x1xf32> to vector<2x256xf32>
    %25 = arith.mulf %19, %24 : vector<2x256xf32>
    %c0_16 = arith.constant 0 : index
    %c0_17 = arith.constant 0 : index
    %c0_18 = arith.constant 0 : index
    %26 = vector.load %arg6[%c0_16, %c0_17, %c0_18] : memref<1x2x256xf32, #tpu.memory_space<vmem>>, vector<1x2x256xf32>
    %27 = vector.shape_cast %26 : vector<1x2x256xf32> to vector<2x256xf32>
    %28 = vector.shape_cast %25 : vector<2x256xf32> to vector<1x2x256xf32>
    tpu.vector_store %arg6[%c0_16, %c0_17, %c0_18], %28 {strides = array<i32>} : memref<1x2x256xf32, #tpu.memory_space<vmem>>, vector<1x2x256xf32>,
    return
  }
  func.func @transform_0(%arg0: i32) -> (i32, i32, i32) {
    %c0_i32 = arith.constant 0 : i32
    %c0_i32_0 = arith.constant 0 : i32
    %c0_i32_1 = arith.constant 0 : i32
    return %arg0, %c0_i32, %c0_i32_0 : i32, i32, i32
  }
  func.func @transform_1(%arg0: i32) -> (i32, i32) {
    %c0_i32 = arith.constant 0 : i32
    %c0_i32_0 = arith.constant 0 : i32
    %c0_i32_1 = arith.constant 0 : i32
    return %c0_i32, %c0_i32_0 : i32, i32
  }
  func.func @transform_2(%arg0: i32) -> (i32, i32, i32) {
    %c0_i32 = arith.constant 0 : i32
    %c0_i32_0 = arith.constant 0 : i32
    %c0_i32_1 = arith.constant 0 : i32
    return %arg0, %c0_i32, %c0_i32_0 : i32, i32, i32
  }
  func.func @transform_3(%arg0: i32) -> (i32, i32) {
    %c0_i32 = arith.constant 0 : i32
    %c0_i32_0 = arith.constant 0 : i32
    %c0_i32_1 = arith.constant 0 : i32
    return %c0_i32, %c0_i32_0 : i32, i32
  }
  func.func @transform_4(%arg0: i32) -> (i32, i32) {
    %c0_i32 = arith.constant 0 : i32
    %c0_i32_0 = arith.constant 0 : i32
    %c0_i32_1 = arith.constant 0 : i32
    return %c0_i32, %c0_i32_0 : i32, i32
  }
  func.func @transform_5(%arg0: i32) -> (i32, i32, i32) {
    %c0_i32 = arith.constant 0 : i32
    %c0_i32_0 = arith.constant 0 : i32
    %c0_i32_1 = arith.constant 0 : i32
    return %arg0, %c0_i32, %c0_i32_0 : i32, i32, i32
  }
}

</mosaic_0001>

<llo_original>
// kernel: tpu_custom_call.1
$region0: #{tpu_custom_call.1}
  #allocation0 [shape = 'u32[]', space=smem, size = 0x4, offset = 0x4, fixed_abs, tag = 'smem constant byte address 0x4 - core index']
  #allocation1 [shape = 'u32[144,128]{1,0:T(1,128)}', space=vmem, size = 0x12000, scoped, tag = 'internal scratch']
  %s0 = inlined_call_operand.vmem [shape: f32[2,8,256], index: 0, kind: input, shape index: {}]
  %s1 = inlined_call_operand.vmem [shape: f32[32,8], index: 1, kind: input, shape index: {}]
  %s2 = inlined_call_operand.vmem [shape: f32[2,32,1], index: 2, kind: input, shape index: {}]
  %s3 = inlined_call_operand.vmem [shape: f32[2,32], index: 3, kind: input, shape index: {}]
  %s4 = inlined_call_operand.vmem [shape: f32[2,1], index: 4, kind: input, shape index: {}]
  %s5 = inlined_call_operand.hbm [shape: f32[2,2,256], index: 5, kind: output, shape index: {}]
  %s6 = sld [smem:[#allocation0]]
  $region53: #{tpu_custom_call.1} parent=0
    _
  %s8 = ssub.s32 1, %s6
  %s9 = scalar_select 0, %s8, %s6
  $region1: #{tpu_custom_call.1} parent=0
    #allocation2 [shape = 'u8[4096]{0}', space=vmem, size = 0x1000, scoped, tag = 'output window, operand 0']
    #allocation3 [shape = 's32[2]{0}', space=sflag, size = 0x8, scoped, tag = 'scoped memory for tpu_custom_call.1']
    %10 = vsyncpa [#allocation3], 0
    %s11 = scalar_lea.sflag [#allocation3], 1
    %12 = vsyncpa %s11, 0
    loop: start=0, step=1, limit=4
    $region2: #{tpu_custom_call.1} parent=1 // loop_pre_header
      _
    $region3: #{tpu_custom_call.1} parent=1 // loop_header
      %s14 = sphi 0, %s18
      %p15 = scmp.ge.s32.totalorder %s14, 4
      %s24 = sphi 0, %s26
      %s27 = sphi 0, %s24
      %s28 = sphi 0, %s27
      %s44 = sphi 0, %s28
      %s48 = sphi 0, %s48
      %s50 = sphi 0, %s48
      %s51 = sphi 0, %s50
      %s65 = sphi 0, %s51
      %s71 = sphi 0, %s73
      %s74 = sphi 0, %s71
      %s75 = sphi 0, %s74
      %s91 = sphi 0, %s75
      %s95 = sphi 0, %s95
      %s97 = sphi 0, %s95
      %s98 = sphi 0, %s97
      %s112 = sphi 0, %s98
      %s116 = sphi 0, %s116
      %s118 = sphi 0, %s116
      %s119 = sphi 0, %s118
      %s133 = sphi 0, %s119
      %s139 = sphi 0, %s141
      %s142 = sphi 0, %s139
      %s143 = sphi 0, %s142
      %s159 = sphi 0, %s143
    $region4: #{tpu_custom_call.1} parent=1 // loop_header_branch
      %17 = sbr.rel (%p15) target = $region8
    $region5: #{tpu_custom_call.1} parent=1 // loop_body
      %s19 = ssub.s32 %s14, 1
      %s20 = ssub.s32 %s14, 2
      %s21 = sadd.s32 %s14, 1
      %s22 = ssub.s32 %s14, %s21
      %p23 = scmp.eq.s32.totalorder %s22, 0
      %s25 = sadd.s32 %s24, 1
      %s26 = scalar_select %p23, %s24, %s25
      %p29 = pneg %p23
      %p30 = scmp.eq.s32.totalorder %s14, 1
      %p31 = por %p29, %p30
      %p32 = scmp.ne.s32.totalorder %s24, %s27
      %p33 = scmp.eq.s32.totalorder %s14, 0
      %p34 = por %p32, %p33
      %p35 = scmp.ne.s32.totalorder %s24, %s27
      %p36 = scmp.eq.s32.totalorder %s19, 1
      %p37 = por %p35, %p36
      %p38 = scmp.ne.s32.totalorder %s27, %s28
      %p39 = scmp.eq.s32.totalorder %s19, 0
      %p40 = por %p38, %p39
      %p41 = scmp.ne.s32.totalorder %s27, %s28
      %p42 = scmp.eq.s32.totalorder %s20, 1
      %p43 = por %p41, %p42
      %p45 = scmp.ne.s32.totalorder %s28, %s44
      %p46 = scmp.eq.s32.totalorder %s20, 0
      %p47 = por %p45, %p46
      %s49 = sadd.s32 %s48, 1
      %p52 = scmp.eq.s32.totalorder %s14, 1
      %p53 = scmp.ne.s32.totalorder %s48, %s50
      %p54 = scmp.eq.s32.totalorder %s14, 0
      %p55 = por %p53, %p54
      %p56 = scmp.ne.s32.totalorder %s48, %s50
      %p57 = scmp.eq.s32.totalorder %s19, 1
      %p58 = por %p56, %p57
      %p59 = scmp.ne.s32.totalorder %s50, %s51
      %p60 = scmp.eq.s32.totalorder %s19, 0
      %p61 = por %p59, %p60
      %p62 = scmp.ne.s32.totalorder %s50, %s51
      %p63 = scmp.eq.s32.totalorder %s20, 1
      %p64 = por %p62, %p63
      %p66 = scmp.ne.s32.totalorder %s51, %s65
      %p67 = scmp.eq.s32.totalorder %s20, 0
      %p68 = por %p66, %p67
      %s69 = ssub.s32 %s14, %s21
      %p70 = scmp.eq.s32.totalorder %s69, 0
      %s72 = sadd.s32 %s71, 1
      %s73 = scalar_select %p70, %s71, %s72
      %p76 = pneg %p70
      %p77 = scmp.eq.s32.totalorder %s14, 1
      %p78 = por %p76, %p77
      %p79 = scmp.ne.s32.totalorder %s71, %s74
      %p80 = scmp.eq.s32.totalorder %s14, 0
      %p81 = por %p79, %p80
      %p82 = scmp.ne.s32.totalorder %s71, %s74
      %p83 = scmp.eq.s32.totalorder %s19, 1
      %p84 = por %p82, %p83
      %p85 = scmp.ne.s32.totalorder %s74, %s75
      %p86 = scmp.eq.s32.totalorder %s19, 0
      %p87 = por %p85, %p86
      %p88 = scmp.ne.s32.totalorder %s74, %s75
      %p89 = scmp.eq.s32.totalorder %s20, 1
      %p90 = por %p88, %p89
      %p92 = scmp.ne.s32.totalorder %s75, %s91
      %p93 = scmp.eq.s32.totalorder %s20, 0
      %p94 = por %p92, %p93
      %s96 = sadd.s32 %s95, 1
      %p99 = scmp.eq.s32.totalorder %s14, 1
      %p100 = scmp.ne.s32.totalorder %s95, %s97
      %p101 = scmp.eq.s32.totalorder %s14, 0
      %p102 = por %p100, %p101
      %p103 = scmp.ne.s32.totalorder %s95, %s97
      %p104 = scmp.eq.s32.totalorder %s19, 1
      %p105 = por %p103, %p104
      %p106 = scmp.ne.s32.totalorder %s97, %s98
      %p107 = scmp.eq.s32.totalorder %s19, 0
      %p108 = por %p106, %p107
      %p109 = scmp.ne.s32.totalorder %s97, %s98
      %p110 = scmp.eq.s32.totalorder %s20, 1
      %p111 = por %p109, %p110
      %p113 = scmp.ne.s32.totalorder %s98, %s112
      %p114 = scmp.eq.s32.totalorder %s20, 0
      %p115 = por %p113, %p114
      %s117 = sadd.s32 %s116, 1
      %p120 = scmp.eq.s32.totalorder %s14, 1
      %p121 = scmp.ne.s32.totalorder %s116, %s118
      %p122 = scmp.eq.s32.totalorder %s14, 0
      %p123 = por %p121, %p122
      %p124 = scmp.ne.s32.totalorder %s116, %s118
      %p125 = scmp.eq.s32.totalorder %s19, 1
      %p126 = por %p124, %p125
      %p127 = scmp.ne.s32.totalorder %s118, %s119
      %p128 = scmp.eq.s32.totalorder %s19, 0
      %p129 = por %p127, %p128
      %p130 = scmp.ne.s32.totalorder %s118, %s119
      %p131 = scmp.eq.s32.totalorder %s20, 1
      %p132 = por %p130, %p131
      %p134 = scmp.ne.s32.totalorder %s119, %s133
      %p135 = scmp.eq.s32.totalorder %s20, 0
      %p136 = por %p134, %p135
      %s137 = ssub.s32 %s14, %s21
      %p138 = scmp.eq.s32.totalorder %s137, 0
      %s140 = sadd.s32 %s139, 1
      %s141 = scalar_select %p138, %s139, %s140
      %p144 = pneg %p138
      %p145 = scmp.eq.s32.totalorder %s14, 1
      %p146 = por %p144, %p145
      %p147 = scmp.ne.s32.totalorder %s139, %s142
      %p148 = scmp.eq.s32.totalorder %s14, 0
      %p149 = por %p147, %p148
      %p150 = scmp.ne.s32.totalorder %s139, %s142
      %p151 = scmp.eq.s32.totalorder %s19, 1
      %p152 = por %p150, %p151
      %p153 = scmp.ne.s32.totalorder %s142, %s143
      %p154 = scmp.eq.s32.totalorder %s19, 0
      %p155 = por %p153, %p154
      %p156 = scmp.ne.s32.totalorder %s142, %s143
      %p157 = scmp.eq.s32.totalorder %s20, 1
      %p158 = por %p156, %p157
      %p160 = scmp.ne.s32.totalorder %s143, %s159
      %p161 = scmp.eq.s32.totalorder %s20, 0
      %p162 = por %p160, %p161
      %p163 = scmp.le.s32.totalorder 1, %s14
      %p164 = scmp.lt.s32.totalorder %s14, 3
      %p165 = pnand %p163, %p164
      %p166 = pneg %p165
      // Predicated region
      $region9: #{tpu_custom_call.1} parent=5 // pred_check
        _
      $region10: #{tpu_custom_call.1} parent=5 // pred_check_branch
        %168 = sbr.rel (%p165) target = $region12
      $region11: #{tpu_custom_call.1} parent=5 // pred_region
        %s169 = ssub.s32 %s14, 1
        // Predicated region
        $region13: #{tpu_custom_call.1} parent=11 // pred_check
          %p170 = pneg %p61
        $region14: #{tpu_custom_call.1} parent=11 // pred_check_branch
          %172 = sbr.rel (%p170) target = $region16
        $region15: #{tpu_custom_call.1} parent=11 // pred_region
          _
        $region16: #{tpu_custom_call.1} parent=11 // pred_fallthru
          _
        // Predicated region
        $region17: #{tpu_custom_call.1} parent=11 // pred_check
          %p173 = pneg %p108
        $region18: #{tpu_custom_call.1} parent=11 // pred_check_branch
          %175 = sbr.rel (%p173) target = $region20
        $region19: #{tpu_custom_call.1} parent=11 // pred_region
          _
        $region20: #{tpu_custom_call.1} parent=11 // pred_fallthru
          _
        // Predicated region
        $region21: #{tpu_custom_call.1} parent=11 // pred_check
          %p176 = pneg %p129
        $region22: #{tpu_custom_call.1} parent=11 // pred_check_branch
          %178 = sbr.rel (%p176) target = $region24
        $region23: #{tpu_custom_call.1} parent=11 // pred_region
          _
        $region24: #{tpu_custom_call.1} parent=11 // pred_fallthru
          _
      $region12: #{tpu_custom_call.1} parent=5 // pred_fallthru
        _
      %p179 = scmp.lt.s32.totalorder %s14, 2
      // Predicated region
      $region25: #{tpu_custom_call.1} parent=5 // pred_check
        %p180 = pneg %p179
      $region26: #{tpu_custom_call.1} parent=5 // pred_check_branch
        %182 = sbr.rel (%p180) target = $region28
      $region27: #{tpu_custom_call.1} parent=5 // pred_region
        // Predicated region
        $region29: #{tpu_custom_call.1} parent=27 // pred_check
          %p183 = pneg %p34
        $region30: #{tpu_custom_call.1} parent=27 // pred_check_branch
          %185 = sbr.rel (%p183) target = $region32
        $region31: #{tpu_custom_call.1} parent=27 // pred_region
          %p186 = scmp.lt.s32.totalorder %s14, 1
          %s187 = scalar_select %p186, %s14, 1
          %s188 = smul.addr %s187, 2
          %s189 = smul.addr %s188, 8
          %s190 = scalar_lea.vmem %s0, %s189
        $region32: #{tpu_custom_call.1} parent=27 // pred_fallthru
          _
        // Predicated region
        $region33: #{tpu_custom_call.1} parent=27 // pred_check
          %p191 = pneg %p81
        $region34: #{tpu_custom_call.1} parent=27 // pred_check_branch
          %193 = sbr.rel (%p191) target = $region36
        $region35: #{tpu_custom_call.1} parent=27 // pred_region
          %p194 = scmp.lt.s32.totalorder %s14, 1
          %s195 = scalar_select %p194, %s14, 1
          %s196 = smul.addr %s195, 4
          %s197 = smul.addr %s196, 8
          %s198 = scalar_lea.vmem %s2, %s197
        $region36: #{tpu_custom_call.1} parent=27 // pred_fallthru
          _
      $region28: #{tpu_custom_call.1} parent=5 // pred_fallthru
        _
      %p199 = scmp.le.s32.totalorder 1, %s14
      %p200 = scmp.lt.s32.totalorder %s14, 3
      %p201 = pnand %p199, %p200
      %p202 = pneg %p201
      // Predicated region
      $region37: #{tpu_custom_call.1} parent=5 // pred_check
        _
      $region38: #{tpu_custom_call.1} parent=5 // pred_check_branch
        %204 = sbr.rel (%p201) target = $region40
      $region39: #{tpu_custom_call.1} parent=5 // pred_region
        %s205 = ssub.s32 %s14, 1
        %p206 = scmp.lt.s32.totalorder %s19, 1
        %s207 = scalar_select %p206, %s19, 1
        %s208 = smul.addr %s207, 2
        %s209 = smul.addr %s208, 8
        %s210 = scalar_lea.vmem %s0, %s209
        %p211 = pneg %p40
        %p212 = pneg %p37
        %p213 = pneg %p61
        %p214 = pneg %p58
        %p215 = scmp.lt.s32.totalorder %s19, 1
        %s216 = scalar_select %p215, %s19, 1
        %s217 = smul.addr %s216, 4
        %s218 = smul.addr %s217, 8
        %s219 = scalar_lea.vmem %s2, %s218
        %p220 = pneg %p87
        %p221 = pneg %p84
        %p222 = pneg %p108
        %p223 = pneg %p105
        %p224 = pneg %p129
        %p225 = pneg %p126
        %p226 = pneg %p155
        %p227 = pneg %p152
        %s228 = sand.u32 %s142, 1
        %s229 = scalar_lea.sflag [#allocation3], %s228
        %s230 = sand.u32 %s142, 1
        %s231 = smul.addr %s230, 4
        %s232 = scalar_lea.vmem [#allocation2], %s231
        %p233 = scmp.lt.s32.totalorder %s19, 1
        %s234 = scalar_select %p233, %s19, 1
        %s235 = smul.addr %s234, 2
        %s236 = smul.addr %s235, 8
        %s237 = scalar_lea.vmem %s0, %s236
        %p238 = scmp.lt.s32.totalorder %s19, 1
        %s239 = scalar_select %p238, %s19, 1
        %s240 = smul.addr %s239, 4
        %s241 = smul.addr %s240, 8
        %s242 = scalar_lea.vmem %s2, %s241
        %v243 = vld [vmem:[%s1] sm:$0xff]
        %v244 = vld [vmem:[%s1 + $0x8] sm:$0xff]
        %v245 = vld [vmem:[%s1 + $0x10] sm:$0xff]
        %v246 = vld [vmem:[%s1 + $0x18] sm:$0xff]
        %v247 = vld [vmem:[%s3] sm:$0x3]
        %v248 = vld [vmem:[%s4] sm:$0x3]
        %v249 = vld [vmem:[%s237] sm:$0xff]
        %v250 = vld [vmem:[%s237 + $0x8] sm:$0xff]
        %v251 = vld [vmem:[%s242] sm:$0xff]
        %v252 = vld [vmem:[%s242 + $0x8] sm:$0xff]
        %v253 = vld [vmem:[%s242 + $0x10] sm:$0xff]
        %v254 = vld [vmem:[%s242 + $0x18] sm:$0xff]
        %256 = vset.pattern.permute.xlu0 0
        %257 = vperm.xlu0 %256, %v251
        %v258 = vpop.permute.xlu0 %257
        %261 = vset.pattern.permute.xlu0 0
        %262 = vperm.xlu0 %261, %v252
        %v263 = vpop.permute.xlu0 %262
        %266 = vset.pattern.permute.xlu0 0
        %267 = vperm.xlu0 %266, %v253
        %v268 = vpop.permute.xlu0 %267
        %271 = vset.pattern.permute.xlu0 0
        %272 = vperm.xlu0 %271, %v254
        %v273 = vpop.permute.xlu0 %272
        %vm275 = vcmask 64512
        %v277 = vsel %vm275, %v243, 0
        %v280 = vsel %vm275, %v244, 0
        %v283 = vsel %vm275, %v245, 0
        %v286 = vsel %vm275, %v246, 0
        %288 = vmatprep.subr.mxu0 %v250
        %289 = vmatpush1.msra.mxu0 %v249
        %290 = vmatprep.subr.mxu0 0.0
        %291 = vmatpush1.msra.mxu0 0.0
        %292 = vmatprep.subr.mxu0 0.0
        %293 = vmatpush1.msra.mxu0 0.0
        %294 = vmatprep.subr.mxu0 0.0
        %295 = vmatpush1.msra.mxu0 0.0
        %296 = vmatprep.subr.mxu0 0.0
        %297 = vmatpush1.msra.mxu0 0.0
        %298 = vmatprep.subr.mxu0 0.0
        %299 = vmatpush1.msra.mxu0 0.0
        %300 = vmatprep.subr.mxu0 0.0
        %301 = vmatpush1.msra.mxu0 0.0
        %302 = vmatprep.subr.mxu0 0.0
        %303 = vmatpush1.msra.mxu0 0.0
        %304 = vmatprep.subr.mxu0 0.0
        %305 = vmatpush1.msra.mxu0 0.0
        %306 = vmatprep.subr.mxu0 0.0
        %307 = vmatpush1.msra.mxu0 0.0
        %308 = vmatprep.subr.mxu0 0.0
        %309 = vmatpush1.msra.mxu0 0.0
        %310 = vmatprep.subr.mxu0 0.0
        %311 = vmatpush1.msra.mxu0 0.0
        %312 = vmatprep.subr.mxu0 0.0
        %313 = vmatpush1.msra.mxu0 0.0
        %314 = vmatprep.subr.mxu0 0.0
        %315 = vmatpush1.msra.mxu0 0.0
        %316 = vmatprep.subr.mxu0 0.0
        %317 = vmatpush1.msra.mxu0 0.0
        %318 = vmatprep.subr.mxu0 0.0
        %319 = vmatpush1.msra.mxu0 0.0
        %320 = vmatprep.subr.mxu0 0.0
        %321 = vmatpush1.msra.mxu0 0.0
        %322 = vmatprep.subr.mxu0 0.0
        %323 = vmatpush1.msra.mxu0 0.0
        %324 = vmatprep.subr.mxu0 0.0
        %325 = vmatpush1.msra.mxu0 0.0
        %326 = vmatprep.subr.mxu0 0.0
        %327 = vmatpush1.msra.mxu0 0.0
        %328 = vmatprep.subr.mxu0 0.0
        %329 = vmatpush1.msra.mxu0 0.0
        %330 = vmatprep.subr.mxu0 0.0
        %331 = vmatpush1.msra.mxu0 0.0
        %332 = vmatprep.subr.mxu0 0.0
        %333 = vmatpush1.msra.mxu0 0.0
        %334 = vmatprep.subr.mxu0 0.0
        %335 = vmatpush1.msra.mxu0 0.0
        %336 = vmatprep.subr.mxu0 0.0
        %337 = vmatpush1.msra.mxu0 0.0
        %338 = vmatprep.subr.mxu0 0.0
        %339 = vmatpush1.msra.mxu0 0.0
        %340 = vmatprep.subr.mxu0 0.0
        %341 = vmatpush1.msra.mxu0 0.0
        %342 = vmatprep.subr.mxu0 0.0
        %343 = vmatpush1.msra.mxu0 0.0
        %344 = vmatprep.subr.mxu0 0.0
        %345 = vmatpush1.msra.mxu0 0.0
        %346 = vmatprep.subr.mxu0 0.0
        %347 = vmatpush1.msra.mxu0 0.0
        %348 = vmatprep.subr.mxu0 0.0
        %349 = vmatpush1.msra.mxu0 0.0
        %350 = vmatprep.subr.mxu0 0.0
        %351 = vmatpush1.msra.mxu0 0.0
        %352 = vmatprep.mubr.f32.mxu0 0.0
        %353 = vmatmul.mubr.f32.gmra.mrb[0].mxu0 %v277
        %v354 = vpop.f32.mrb[0].mxu0
        %v355 = vadd.f32 %v258, %v354
        %v356 = vpop.f32.mrb[0].mxu0
        %v357 = vadd.f32 %v258, %v356
        %358 = vmatprep.mubr.f32.mxu0 0.0
        %359 = vmatmul.mubr.f32.gmra.mrb[0].mxu0 %v280
        %v360 = vpop.f32.mrb[0].mxu0
        %v361 = vadd.f32 %v263, %v360
        %v362 = vpop.f32.mrb[0].mxu0
        %v363 = vadd.f32 %v263, %v362
        %364 = vmatprep.mubr.f32.mxu0 0.0
        %365 = vmatmul.mubr.f32.gmra.mrb[0].mxu0 %v283
        %v366 = vpop.f32.mrb[0].mxu0
        %v367 = vadd.f32 %v268, %v366
        %v368 = vpop.f32.mrb[0].mxu0
        %v369 = vadd.f32 %v268, %v368
        %370 = vmatprep.mubr.f32.mxu0 0.0
        %371 = vmatmul.mubr.f32.gmra.mrb[0].mxu0 %v286
        %v372 = vpop.f32.mrb[0].mxu0
        %v373 = vadd.f32 %v273, %v372
        %v374 = vpop.f32.mrb[0].mxu0
        %v375 = vadd.f32 %v273, %v374
        %376 = vdwg.mxu0
        %v377 = vmax.f32 %v355, 0.0
        %v378 = vmax.f32 %v357, 0.0
        %v379 = vmax.f32 %v361, 0.0
        %v380 = vmax.f32 %v363, 0.0
        %v381 = vmax.f32 %v367, 0.0
        %v382 = vmax.f32 %v369, 0.0
        %v383 = vmax.f32 %v373, 0.0
        %v384 = vmax.f32 %v375, 0.0
        %386 = vset.pattern.permute.xlu0 0
        %387 = vperm.xlu0 %386, %v248
        %v388 = vpop.permute.xlu0 %387
        %vm390 = vcmask 261120
        %v392 = vsel %vm390, %v247, 0
        %394 = vmatprep.subr.mxu0 %v378
        %395 = vmatpush1.msra.mxu0 %v377
        %396 = vmatprep.subr.mxu0 %v380
        %397 = vmatpush1.msra.mxu0 %v379
        %398 = vmatprep.subr.mxu0 %v382
        %399 = vmatpush1.msra.mxu0 %v381
        %400 = vmatprep.subr.mxu0 %v384
        %401 = vmatpush1.msra.mxu0 %v383
        %402 = vmatprep.subr.mxu0 0.0
        %403 = vmatpush1.msra.mxu0 0.0
        %404 = vmatprep.subr.mxu0 0.0
        %405 = vmatpush1.msra.mxu0 0.0
        %406 = vmatprep.subr.mxu0 0.0
        %407 = vmatpush1.msra.mxu0 0.0
        %408 = vmatprep.subr.mxu0 0.0
        %409 = vmatpush1.msra.mxu0 0.0
        %410 = vmatprep.subr.mxu0 0.0
        %411 = vmatpush1.msra.mxu0 0.0
        %412 = vmatprep.subr.mxu0 0.0
        %413 = vmatpush1.msra.mxu0 0.0
        %414 = vmatprep.subr.mxu0 0.0
        %415 = vmatpush1.msra.mxu0 0.0
        %416 = vmatprep.subr.mxu0 0.0
        %417 = vmatpush1.msra.mxu0 0.0
        %418 = vmatprep.subr.mxu0 0.0
        %419 = vmatpush1.msra.mxu0 0.0
        %420 = vmatprep.subr.mxu0 0.0
        %421 = vmatpush1.msra.mxu0 0.0
        %422 = vmatprep.subr.mxu0 0.0
        %423 = vmatpush1.msra.mxu0 0.0
        %424 = vmatprep.subr.mxu0 0.0
        %425 = vmatpush1.msra.mxu0 0.0
        %426 = vmatprep.subr.mxu0 0.0
        %427 = vmatpush1.msra.mxu0 0.0
        %428 = vmatprep.subr.mxu0 0.0
        %429 = vmatpush1.msra.mxu0 0.0
        %430 = vmatprep.subr.mxu0 0.0
        %431 = vmatpush1.msra.mxu0 0.0
        %432 = vmatprep.subr.mxu0 0.0
        %433 = vmatpush1.msra.mxu0 0.0
        %434 = vmatprep.subr.mxu0 0.0
        %435 = vmatpush1.msra.mxu0 0.0
        %436 = vmatprep.subr.mxu0 0.0
        %437 = vmatpush1.msra.mxu0 0.0
        %438 = vmatprep.subr.mxu0 0.0
        %439 = vmatpush1.msra.mxu0 0.0
        %440 = vmatprep.subr.mxu0 0.0
        %441 = vmatpush1.msra.mxu0 0.0
        %442 = vmatprep.subr.mxu0 0.0
        %443 = vmatpush1.msra.mxu0 0.0
        %444 = vmatprep.subr.mxu0 0.0
        %445 = vmatpush1.msra.mxu0 0.0
        %446 = vmatprep.subr.mxu0 0.0
        %447 = vmatpush1.msra.mxu0 0.0
        %448 = vmatprep.subr.mxu0 0.0
        %449 = vmatpush1.msra.mxu0 0.0
        %450 = vmatprep.subr.mxu0 0.0
        %451 = vmatpush1.msra.mxu0 0.0
        %452 = vmatprep.subr.mxu0 0.0
        %453 = vmatpush1.msra.mxu0 0.0
        %454 = vmatprep.subr.mxu0 0.0
        %455 = vmatpush1.msra.mxu0 0.0
        %456 = vmatprep.subr.mxu0 0.0
        %457 = vmatpush1.msra.mxu0 0.0
        %458 = vmatprep.mubr.f32.mxu0 0.0
        %459 = vmatmul.mubr.f32.gmra.mrb[0].mxu0 %v392
        %v460 = vpop.f32.mrb[0].mxu0
        %v461 = vadd.f32 %v388, %v460
        %v462 = vpop.f32.mrb[0].mxu0
        %v463 = vadd.f32 %v388, %v462
        %464 = vdwg.mxu0
        %vm465 = vcmask 1041408
        %v466 = vsel %vm465, %v461, -inf
        %v467 = vsel %vm465, %v463, -inf
        %v468 = vmax.f32 %v466, %v467
        %469 = vmax.xlane.f32.xlu0 %v468
        %v470 = vpop.xlane.xlu0 %469
        %v471 = vsub.f32 %v461, %v470
        %v472 = vsub.f32 %v463, %v470
        %v473 = vmul.f32 %v471, 1.442695
        %v474 = vpow.pop %v473
        %v475 = vmul.f32 %v472, 1.442695
        %v476 = vpow.pop %v475
        %v477 = vsel %vm465, %v474, 0.0
        %v478 = vsel %vm465, %v476, 0.0
        %v479 = vadd.f32 %v477, %v478
        %480 = vadd.xlane.f32.xlu0 %v479
        %v481 = vpop.xlane.xlu0 %480
        %v482 = vrcp.pop %v481
        %v483 = vmul.f32 1.0, %v482
        %v484 = vmul.f32 %v474, %v483
        %v485 = vmul.f32 %v476, %v483
        %v488 = vcombine.low %v484, %v485
        %v490 = vunpack.c.l.s4 1983009808
        %v491 = vunpack.c.0.s8 %v490
        %v492 = vlaneseq
        %v493 = vshrl.u32 %v492, 7
        %v494 = vsub.s32 %v491, %v493
        %v495 = vrot.slane %v488, %v494
        %497 = vst [vmem:[%s232] sm:$0xf] %v495
        %s498 = sand.u32 %s142, 1
        %s499 = scalar_lea.sflag [#allocation3], %s498
        %s500 = sand.u32 %s142, 1
        %s501 = smul.addr %s500, 4
        %s502 = scalar_lea.vmem [#allocation2], %s501
        // Predicated region
        $region41: #{tpu_custom_call.1} parent=39 // pred_check
          %p503 = pneg %p152
        $region42: #{tpu_custom_call.1} parent=39 // pred_check_branch
          %505 = sbr.rel (%p503) target = $region44
        $region43: #{tpu_custom_call.1} parent=39 // pred_region
          %s507 = ssub.s32 64, 64
          %508 = vsyncadd %s499, %s507
          %s509 = smul.addr %s19, 2
          %s510 = smul.addr %s509, 32
          %s511 = scalar_lea.hbm %s5, %s510
          %s513 = sshll.u32 %s502, 4
          %s514 = int_to_ptr.vmem [resolvable:$true] %s513
          %516 = dma.vmem_to_hbm [thread:$0]  %s514, 64, %s511, %s499
        $region44: #{tpu_custom_call.1} parent=39 // pred_fallthru
          _
      $region40: #{tpu_custom_call.1} parent=5 // pred_fallthru
        _
      %p517 = scmp.le.s32.totalorder 2, %s14
      // Predicated region
      $region45: #{tpu_custom_call.1} parent=5 // pred_check
        %p518 = pneg %p517
      $region46: #{tpu_custom_call.1} parent=5 // pred_check_branch
        %520 = sbr.rel (%p518) target = $region48
      $region47: #{tpu_custom_call.1} parent=5 // pred_region
        %s521 = ssub.s32 %s14, 2
        // Predicated region
        $region49: #{tpu_custom_call.1} parent=47 // pred_check
          %p522 = pneg %p158
        $region50: #{tpu_custom_call.1} parent=47 // pred_check_branch
          %524 = sbr.rel (%p522) target = $region52
        $region51: #{tpu_custom_call.1} parent=47 // pred_region
          %s525 = sand.u32 %s143, 1
          %s526 = scalar_lea.sflag [#allocation3], %s525
          %s527 = sand.u32 %s143, 1
          %s528 = smul.addr %s527, 4
          %s529 = scalar_lea.vmem [#allocation2], %s528
          %530 = dma.done %s526, 64
        $region52: #{tpu_custom_call.1} parent=47 // pred_fallthru
          _
      $region48: #{tpu_custom_call.1} parent=5 // pred_fallthru
        _
    $region6: #{tpu_custom_call.1} parent=1 // loop_footer
      %s18 = sadd.s32 1, %s14
    $region7: #{tpu_custom_call.1} parent=1 // loop_footer_branch
      %13 = sbr.rel target = $region3
    $region8: #{tpu_custom_call.1} parent=1 // loop_exit
      _
    %531 = vsyncpa [#allocation3], 1
    %s532 = scalar_lea.sflag [#allocation3], 1
    %533 = vsyncpa %s532, 1

</llo_original>
